<compile_context>
chip_gen: v7x
topology: tpu7x:2x2x1
jax: 0.10.0
libtpu: 0.0.40
codegen_flags: <defaults>
</compile_context>

<pallas_src>
import functools

import jax
import jax.numpy as jnp
from jax.experimental import pallas as pl
from jax.experimental.pallas import tpu as pltpu


def _round_up(n, m):
    return ((n + m - 1) // m) * m


def _mlp_kernel(x_ref, w_in_ref, b_in_ref, w_hid_ref, b_hid_ref,
                w_out_ref, b_out_ref, o_ref, *, n_hidden_layers,
                input_dimension, output_dimension, chunk, use_vpu_out):
    """Fused MLP forward in feature-major layout (batch on the lane axis).

    x_ref     : [D_in, TM]
    w_in_ref  : [H, D_in]        (pre-transposed: out x in)
    b_in_ref  : [H, 1]
    w_hid_ref : [L-1, H, H]      (pre-transposed per layer: out x in)
    b_hid_ref : [L-1, H, 1]
    w_out_ref : [H, D_out]  if use_vpu_out else [D_out, H]
    b_out_ref : [D_out, 1]
    o_ref     : [D_out, TM]
    """
    tm = x_ref.shape[1]
    n_chunks = tm // chunk

    # Hoist all (tiny) parameters out of the chunk loop: loop-invariant values.
    w_in = w_in_ref[...]                                    # [H, D_in]
    b_in = b_in_ref[...]                                    # [H, 1]
    w_in_cols = [w_in[:, d:d + 1] for d in range(input_dimension)]
    w_hids = [w_hid_ref[k] for k in range(n_hidden_layers - 1)]   # [H, H] each
    b_hids = [b_hid_ref[k] for k in range(n_hidden_layers - 1)]   # [H, 1] each
    b_out = b_out_ref[...]                                  # [D_out, 1]
    if use_vpu_out:
        w_out = w_out_ref[...]                              # [H, D_out]
        w_out_cols = [w_out[:, j:j + 1] for j in range(output_dimension)]
    else:
        w_out = w_out_ref[...]                              # [D_out, H]

    def process_chunk(c):
        start = pl.multiple_of(c * chunk, chunk)
        x = x_ref[:, pl.ds(start, chunk)]                   # [D_in, chunk]

        # Input layer: K = D_in is tiny -> VPU FMAs instead of the MXU.
        # h[i, m] = sum_d w_in[i, d] * x[d, m] + b_in[i]
        h = w_in_cols[0] * x[0:1, :]                        # [H, chunk]
        for d in range(1, input_dimension):
            h = h + w_in_cols[d] * x[d:d + 1, :]
        h = jnp.tanh(h + b_in)

        # Hidden layers on the MXU (f32 accumulation), statically unrolled.
        for k in range(n_hidden_layers - 1):
            h = jnp.tanh(
                jnp.dot(w_hids[k], h, preferred_element_type=jnp.float32)
                + b_hids[k]
            )

        # Output layer (no activation).  For tiny d_out use VPU multiply +
        # sublane (XLU) reduction instead of an M=d_out MXU matmul.
        if use_vpu_out:
            outs = [jnp.sum(w_out_cols[j] * h, axis=0, keepdims=True)
                    for j in range(output_dimension)]       # each [1, chunk]
            out = outs[0] if output_dimension == 1 else jnp.concatenate(outs, 0)
        else:
            out = jnp.dot(w_out, h, preferred_element_type=jnp.float32)
        out = out + b_out                                   # [D_out, chunk]
        o_ref[:, pl.ds(start, chunk)] = out.astype(o_ref.dtype)

    if n_chunks == 1:
        process_chunk(0)
    else:
        pl.loop(0, n_chunks)(process_chunk)


def neural_net_forward(x, params, n_hidden_layers, *, block_batch=2048,
                       chunk=256):
    """Run the fused Pallas MLP kernel.

    x: [batch, input_dimension] float32
    params: dict with
      w_in  [D_in, H],   b_in  [1, H]
      w_hid [L-1, H, H], b_hid [L-1, 1, H]
      w_out [H, D_out],  b_out [1, D_out]
    Returns [batch, output_dimension] float32.
    """
    batch, d_in = x.shape
    neurons = params["w_in"].shape[1]
    d_out = params["w_out"].shape[1]
    lane = 128

    # Batch tile (lane axis): clamp to the actual batch (no dead lanes for
    # small/inference calls) but grow toward block_batch for big PINN batches
    # so the per-grid-step overhead is amortized.
    tm = _round_up(max(lane, min(block_batch, batch)), lane)
    # v7x has 2 TensorCores: if one big tile would cover the whole batch,
    # split it so the "parallel" grid axis has >= 2 tiles.
    if _round_up(batch, lane) <= tm and tm >= 2048:
        tm = _round_up(tm // 2, lane)
    # Inner sub-chunk size (lanes) the kernel loops over inside one tile.
    chunk = max(lane, (min(chunk, tm) // lane) * lane)
    if tm % chunk != 0:
        tm = _round_up(tm, chunk)
    padded = _round_up(batch, tm)
    grid = (padded // tm,)

    # Feature-major plumbing (wrapper-side; single pad, no zero-fill+scatter).
    x_t = jnp.pad(x.astype(jnp.float32).T, ((0, 0), (0, padded - batch)))
    w_in_t = params["w_in"].T                        # [H, D_in]
    b_in_t = params["b_in"].T                        # [H, 1]
    w_hid = params["w_hid"]
    b_hid = params["b_hid"]
    if w_hid.shape[0] == 0:
        # n_hidden_layers == 1: avoid zero-sized operands; the kernel never
        # reads these dummy blocks (its unrolled layer loop has 0 iterations).
        w_hid = jnp.zeros((1, neurons, neurons), jnp.float32)
        b_hid = jnp.zeros((1, 1, neurons), jnp.float32)
    w_hid_t = jnp.transpose(w_hid, (0, 2, 1))        # [L-1, H, H]
    b_hid_t = jnp.transpose(b_hid, (0, 2, 1))        # [L-1, H, 1]
    use_vpu_out = d_out <= 8
    # VPU output path wants [H, D_out] (lane-slice a column per output row);
    # MXU fallback wants [D_out, H].
    w_out_arg = params["w_out"] if use_vpu_out else params["w_out"].T
    b_out_t = params["b_out"].T                      # [D_out, 1]

    def const_spec(a):
        ndim = a.ndim
        return pl.BlockSpec(a.shape, lambda i, _n=ndim: (0,) * _n)

    n_hid = n_hidden_layers - 1
    flops = int(2 * padded * (d_in * neurons + n_hid * neurons * neurons
                              + neurons * d_out))
    transcendentals = int(n_hidden_layers * padded * neurons)
    bytes_accessed = int(4 * (padded * (d_in + d_out)
                              + w_in_t.size + b_in_t.size + w_hid_t.size
                              + b_hid_t.size + w_out_arg.size + b_out_t.size))

    kernel = functools.partial(_mlp_kernel,
                               n_hidden_layers=n_hidden_layers,
                               input_dimension=d_in,
                               output_dimension=d_out,
                               chunk=chunk,
                               use_vpu_out=use_vpu_out)

    out_t = pl.pallas_call(
        kernel,
        out_shape=jax.ShapeDtypeStruct((d_out, padded), jnp.float32),
        grid=grid,
        in_specs=[
            pl.BlockSpec((d_in, tm), lambda i: (0, i)),   # x tile (pipelined)
            const_spec(w_in_t), const_spec(b_in_t),        # params: resident
            const_spec(w_hid_t), const_spec(b_hid_t),
            const_spec(w_out_arg), const_spec(b_out_t),
        ],
        out_specs=pl.BlockSpec((d_out, tm), lambda i: (0, i)),
        compiler_params=pltpu.CompilerParams(
            dimension_semantics=("parallel",)),
        cost_estimate=pl.CostEstimate(
            flops=flops,
            transcendentals=transcendentals,
            bytes_accessed=bytes_accessed),
    )(x_t, w_in_t, b_in_t, w_hid_t, b_hid_t, w_out_arg, b_out_t)

    # Back to the PyTorch-facing [batch, D_out] layout.
    return out_t[:, :batch].T


def init_params(key, input_dimension, output_dimension, n_hidden_layers, neurons):
    """Deterministic parameter init (PyTorch-like uniform(-1/sqrt(fan_in), ...))."""
    keys = jax.random.split(key, 6)

    def uniform(k, shape, fan_in):
        bound = 1.0 / jnp.sqrt(jnp.float32(fan_in))
        return jax.random.uniform(k, shape, jnp.float32, -bound, bound)

    return {
        "w_in": uniform(keys[0], (input_dimension, neurons), input_dimension),
        "b_in": uniform(keys[1], (1, neurons), input_dimension),
        "w_hid": uniform(keys[2], (n_hidden_layers - 1, neurons, neurons), neurons),
        "b_hid": uniform(keys[3], (n_hidden_layers - 1, 1, neurons), neurons),
        "w_out": uniform(keys[4], (neurons, output_dimension), neurons),
        "b_out": uniform(keys[5], (1, output_dimension), neurons),
    }


def reference_forward(x, params, n_hidden_layers):
    """Pure-JAX reference (matches the PyTorch forward semantics)."""
    h = jnp.tanh(x @ params["w_in"] + params["b_in"])
    for k in range(n_hidden_layers - 1):
        h = jnp.tanh(h @ params["w_hid"][k] + params["b_hid"][k])
    return h @ params["w_out"] + params["b_out"]


if __name__ == "__main__":
    # Small PINN-style configuration: 2D input (e.g. (t, x)), scalar output.
    input_dimension = 2
    output_dimension = 1
    n_hidden_layers = 3      # => input layer + 2 hidden layers + output layer
    neurons = 32

    key = jax.random.PRNGKey(0)
    k_params, k_x, k_x2 = jax.random.split(key, 3)

    params = init_params(k_params, input_dimension, output_dimension,
                         n_hidden_layers, neurons)

    # Test 1: tiny batch (clamped single 128-lane tile, single chunk).
    x = jax.random.uniform(k_x, (8, input_dimension), jnp.float32)
    out = jax.block_until_ready(neural_net_forward(x, params, n_hidden_layers))
    ref = reference_forward(x, params, n_hidden_layers)
    assert out.shape == (8, output_dimension)
    assert jnp.allclose(out, ref, atol=1e-5, rtol=1e-5), "Pallas kernel mismatch (tiny batch)"

    # Test 2: multi-tile grid + multi-chunk inner loop + padded last tile.
    x2 = jax.random.uniform(k_x2, (300, input_dimension), jnp.float32)
    out2 = jax.block_until_ready(
        neural_net_forward(x2, params, n_hidden_layers, block_batch=256, chunk=128))
    ref2 = reference_forward(x2, params, n_hidden_layers)
    assert out2.shape == (300, output_dimension)
    assert jnp.allclose(out2, ref2, atol=1e-5, rtol=1e-5), "Pallas kernel mismatch (tiled batch)"

    # Test 3: n_hidden_layers == 1 edge case (no hidden MXU layers).
    params1 = init_params(k_params, input_dimension, output_dimension, 1, neurons)
    out3 = jax.block_until_ready(neural_net_forward(x, params1, 1))
    ref3 = reference_forward(x, params1, 1)
    assert jnp.allclose(out3, ref3, atol=1e-5, rtol=1e-5), "Pallas kernel mismatch (1 layer)"

    print("KERNEL_OK")
</pallas_src>

<mosaic_0001>
module attributes {stable_mosaic.version = 11 : i64} {
  func.func @_mlp_kernel(%arg0: i32, %arg1: memref<2x128xf32, #tpu.memory_space<vmem>>, %arg2: memref<32x2xf32, #tpu.memory_space<vmem>>, %arg3: memref<32x1xf32, #tpu.memory_space<vmem>>, %arg4: memref<2x32x32xf32, #tpu.memory_space<vmem>>, %arg5: memref<2x32x1xf32, #tpu.memory_space<vmem>>, %arg6: memref<32x1xf32, #tpu.memory_space<vmem>>, %arg7: memref<1x1xf32, #tpu.memory_space<vmem>>, %arg8: memref<1x128xf32, #tpu.memory_space<vmem>>) attributes {dimension_semantics = [#tpu.dimension_semantics<parallel>], iteration_bounds = array<i64: 1>, scalar_prefetch = 0 : i64, scratch_operands = 0 : i64, tpu.core_type = #tpu.core_type<tc>, window_params = [{transform_indices = @transform_0, window_bounds = array<i64: 2, 128>}, {pipeline_mode = #tpu.pipeline_mode<synchronous>, transform_indices = @transform_1, window_bounds = array<i64: 32, 2>}, {pipeline_mode = #tpu.pipeline_mode<synchronous>, transform_indices = @transform_2, window_bounds = array<i64: 32, 1>}, {pipeline_mode = #tpu.pipeline_mode<synchronous>, transform_indices = @transform_3, window_bounds = array<i64: 2, 32, 32>}, {pipeline_mode = #tpu.pipeline_mode<synchronous>, transform_indices = @transform_4, window_bounds = array<i64: 2, 32, 1>}, {pipeline_mode = #tpu.pipeline_mode<synchronous>, transform_indices = @transform_5, window_bounds = array<i64: 32, 1>}, {pipeline_mode = #tpu.pipeline_mode<synchronous>, transform_indices = @transform_6, window_bounds = array<i64: 1, 1>}, {transform_indices = @transform_7, window_bounds = array<i64: 1, 128>}]} {
    %c0 = arith.constant 0 : index
    %c0_0 = arith.constant 0 : index
    %0 = vector.load %arg2[%c0, %c0_0] : memref<32x2xf32, #tpu.memory_space<vmem>>, vector<32x2xf32>
    %c0_1 = arith.constant 0 : index
    %c0_2 = arith.constant 0 : index
    %1 = vector.load %arg3[%c0_1, %c0_2] : memref<32x1xf32, #tpu.memory_space<vmem>>, vector<32x1xf32>
    %2 = vector.extract_strided_slice %0 {offsets = [0, 0], sizes = [32, 1], strides = [1, 1]} : vector<32x2xf32> to vector<32x1xf32>
    %3 = vector.extract_strided_slice %0 {offsets = [0, 1], sizes = [32, 1], strides = [1, 1]} : vector<32x2xf32> to vector<32x1xf32>
    %c0_3 = arith.constant 0 : index
    %c0_4 = arith.constant 0 : index
    %c0_5 = arith.constant 0 : index
    %4 = vector.load %arg4[%c0_3, %c0_4, %c0_5] : memref<2x32x32xf32, #tpu.memory_space<vmem>>, vector<1x32x32xf32>
    %5 = vector.shape_cast %4 : vector<1x32x32xf32> to vector<32x32xf32>
    %c1 = arith.constant 1 : index
    %c0_6 = arith.constant 0 : index
    %c0_7 = arith.constant 0 : index
    %6 = vector.load %arg4[%c1, %c0_6, %c0_7] : memref<2x32x32xf32, #tpu.memory_space<vmem>>, vector<1x32x32xf32>
    %7 = vector.shape_cast %6 : vector<1x32x32xf32> to vector<32x32xf32>
    %c0_8 = arith.constant 0 : index
    %c0_9 = arith.constant 0 : index
    %c0_10 = arith.constant 0 : index
    %8 = vector.load %arg5[%c0_8, %c0_9, %c0_10] : memref<2x32x1xf32, #tpu.memory_space<vmem>>, vector<1x32x1xf32>
    %9 = vector.shape_cast %8 : vector<1x32x1xf32> to vector<32x1xf32>
    %c1_11 = arith.constant 1 : index
    %c0_12 = arith.constant 0 : index
    %c0_13 = arith.constant 0 : index
    %10 = vector.load %arg5[%c1_11, %c0_12, %c0_13] : memref<2x32x1xf32, #tpu.memory_space<vmem>>, vector<1x32x1xf32>
    %11 = vector.shape_cast %10 : vector<1x32x1xf32> to vector<32x1xf32>
    %c0_14 = arith.constant 0 : index
    %c0_15 = arith.constant 0 : index
    %12 = vector.load %arg7[%c0_14, %c0_15] : memref<1x1xf32, #tpu.memory_space<vmem>>, vector<1x1xf32>
    %c0_16 = arith.constant 0 : index
    %c0_17 = arith.constant 0 : index
    %13 = vector.load %arg6[%c0_16, %c0_17] : memref<32x1xf32, #tpu.memory_space<vmem>>, vector<32x1xf32>
    %c0_i32 = arith.constant 0 : i32
    %14 = tpu.assume_multiple %c0_i32, 128 : i32
    %c0_18 = arith.constant 0 : index
    %15 = arith.index_cast %14 : i32 to index
    %16 = vector.load %arg1[%c0_18, %15] : memref<2x128xf32, #tpu.memory_space<vmem>>, vector<2x128xf32>
    %17 = vector.extract_strided_slice %16 {offsets = [0, 0], sizes = [1, 128], strides = [1, 1]} : vector<2x128xf32> to vector<1x128xf32>
    %18 = vector.broadcast %2 : vector<32x1xf32> to vector<32x128xf32>
    %19 = vector.broadcast %17 : vector<1x128xf32> to vector<32x128xf32>
    %20 = arith.mulf %18, %19 : vector<32x128xf32>
    %21 = vector.extract_strided_slice %16 {offsets = [1, 0], sizes = [1, 128], strides = [1, 1]} : vector<2x128xf32> to vector<1x128xf32>
    %22 = vector.broadcast %3 : vector<32x1xf32> to vector<32x128xf32>
    %23 = vector.broadcast %21 : vector<1x128xf32> to vector<32x128xf32>
    %24 = arith.mulf %22, %23 : vector<32x128xf32>
    %25 = arith.addf %20, %24 : vector<32x128xf32>
    %26 = vector.broadcast %1 : vector<32x1xf32> to vector<32x128xf32>
    %27 = arith.addf %25, %26 : vector<32x128xf32>
    %28 = math.tanh %27 : vector<32x128xf32>
    %cst = arith.constant dense<0.000000e+00> : vector<32x128xf32>
    %29 = tpu.matmul %5, %28, %cst {dimension_numbers = #tpu.dot_dimension_numbers<[1], [0], [0], [1], [0, 0, 1, 1], [], []>} : vector<32x32xf32>, vector<32x128xf32>, vector<32x128xf32> -> vector<32x128xf32>
    %30 = vector.broadcast %9 : vector<32x1xf32> to vector<32x128xf32>
    %31 = arith.addf %29, %30 : vector<32x128xf32>
    %32 = math.tanh %31 : vector<32x128xf32>
    %cst_19 = arith.constant dense<0.000000e+00> : vector<32x128xf32>
    %33 = tpu.matmul %7, %32, %cst_19 {dimension_numbers = #tpu.dot_dimension_numbers<[1], [0], [0], [1], [0, 0, 1, 1], [], []>} : vector<32x32xf32>, vector<32x128xf32>, vector<32x128xf32> -> vector<32x128xf32>
    %34 = vector.broadcast %11 : vector<32x1xf32> to vector<32x128xf32>
    %35 = arith.addf %33, %34 : vector<32x128xf32>
    %36 = math.tanh %35 : vector<32x128xf32>
    %37 = vector.broadcast %13 : vector<32x1xf32> to vector<32x128xf32>
    %38 = arith.mulf %37, %36 : vector<32x128xf32>
    %cst_20 = arith.constant dense<0.000000e+00> : vector<128xf32>
    %39 = vector.multi_reduction <add>, %38, %cst_20 [0] : vector<32x128xf32> to vector<128xf32>
    %40 = vector.shape_cast %39 : vector<128xf32> to vector<1x128xf32>
    %41 = vector.broadcast %12 : vector<1x1xf32> to vector<1x128xf32>
    %42 = arith.addf %40, %41 : vector<1x128xf32>
    %c0_21 = arith.constant 0 : index
    %43 = arith.index_cast %14 : i32 to index
    %44 = vector.load %arg8[%c0_21, %43] : memref<1x128xf32, #tpu.memory_space<vmem>>, vector<1x128xf32>
    tpu.vector_store %arg8[%c0_21, %43], %42 {strides = array<i32>} : memref<1x128xf32, #tpu.memory_space<vmem>>, vector<1x128xf32>,
    return
  }
  func.func @transform_0(%arg0: i32) -> (i32, i32) {
    %c0_i32 = arith.constant 0 : i32
    %c0_i32_0 = arith.constant 0 : i32
    return %c0_i32, %arg0 : i32, i32
  }
  func.func @transform_1(%arg0: i32) -> (i32, i32) {
    %c0_i32 = arith.constant 0 : i32
    %c0_i32_0 = arith.constant 0 : i32
    %c0_i32_1 = arith.constant 0 : i32
    return %c0_i32, %c0_i32_0 : i32, i32
  }
  func.func @transform_2(%arg0: i32) -> (i32, i32) {
    %c0_i32 = arith.constant 0 : i32
    %c0_i32_0 = arith.constant 0 : i32
    %c0_i32_1 = arith.constant 0 : i32
    return %c0_i32, %c0_i32_0 : i32, i32
  }
  func.func @transform_3(%arg0: i32) -> (i32, i32, i32) {
    %c0_i32 = arith.constant 0 : i32
    %c0_i32_0 = arith.constant 0 : i32
    %c0_i32_1 = arith.constant 0 : i32
    %c0_i32_2 = arith.constant 0 : i32
    return %c0_i32, %c0_i32_0, %c0_i32_1 : i32, i32, i32
  }
  func.func @transform_4(%arg0: i32) -> (i32, i32, i32) {
    %c0_i32 = arith.constant 0 : i32
    %c0_i32_0 = arith.constant 0 : i32
    %c0_i32_1 = arith.constant 0 : i32
    %c0_i32_2 = arith.constant 0 : i32
    return %c0_i32, %c0_i32_0, %c0_i32_1 : i32, i32, i32
  }
  func.func @transform_5(%arg0: i32) -> (i32, i32) {
    %c0_i32 = arith.constant 0 : i32
    %c0_i32_0 = arith.constant 0 : i32
    %c0_i32_1 = arith.constant 0 : i32
    return %c0_i32, %c0_i32_0 : i32, i32
  }
  func.func @transform_6(%arg0: i32) -> (i32, i32) {
    %c0_i32 = arith.constant 0 : i32
    %c0_i32_0 = arith.constant 0 : i32
    %c0_i32_1 = arith.constant 0 : i32
    return %c0_i32, %c0_i32_0 : i32, i32
  }
  func.func @transform_7(%arg0: i32) -> (i32, i32) {
    %c0_i32 = arith.constant 0 : i32
    %c0_i32_0 = arith.constant 0 : i32
    return %c0_i32, %arg0 : i32, i32
  }
}

</mosaic_0001>

<llo_original>
// kernel: tpu_custom_call.1
$region0: #{tpu_custom_call.1}
  #allocation0 [shape = 'u32[]', space=smem, size = 0x4, offset = 0x4, fixed_abs, tag = 'smem constant byte address 0x4 - core index']
  #allocation1 [shape = 'u32[144,128]{1,0:T(1,128)}', space=vmem, size = 0x12000, scoped, tag = 'internal scratch']
  #allocation2 [shape = 'f32[1,1]{1,0:T(1,128)S(1)}', space=vmem, size = 0x200, scoped, tag = 'scoped memory for tpu_custom_call.1']
  %s0 = inlined_call_operand.vmem [shape: f32[2,128], index: 0, kind: input, shape index: {}]
  %s1 = inlined_call_operand.vmem [shape: f32[32,2], index: 1, kind: input, shape index: {}]
  %s2 = inlined_call_operand.vmem [shape: f32[32,1], index: 2, kind: input, shape index: {}]
  %s3 = inlined_call_operand.vmem [shape: f32[2,32,32], index: 3, kind: input, shape index: {}]
  %s4 = inlined_call_operand.vmem [shape: f32[2,32,1], index: 4, kind: input, shape index: {}]
  %s5 = inlined_call_operand.vmem [shape: f32[32,1], index: 5, kind: input, shape index: {}]
  %s6 = inlined_call_operand.<no memory space> [shape: f32[1,1], index: 6, kind: input, shape index: {}]
  %s7 = inlined_call_operand.hbm [shape: f32[1,128], index: 7, kind: output, shape index: {}]
  %s8 = sld [smem:[#allocation0]]
  $region38: #{tpu_custom_call.1} parent=0
    _
  %s10 = ssub.s32 1, %s8
  %s11 = scalar_select 0, %s10, %s8
  %v12 = vstv %s6
  %13 = vst [vmem:[#allocation2] sm:$0x1] %v12
  $region1: #{tpu_custom_call.1} parent=0
    #allocation3 [shape = 'u8[512]{0}', space=vmem, size = 0x400, scoped, tag = 'output window, operand 0, single buffered']
    #allocation4 [shape = 's32[1]{0}', space=sflag, size = 0x4, scoped, tag = 'scoped memory for tpu_custom_call.1']
    %14 = vsyncpa [#allocation4], 0
    // Predicated region
    $region2: #{tpu_custom_call.1} parent=1 // pred_check
      _
    $region3: #{tpu_custom_call.1} parent=1 // pred_check_branch
      %16 = sbr.rel (0) target = $region5
    $region4: #{tpu_custom_call.1} parent=1 // pred_region
      _
    $region5: #{tpu_custom_call.1} parent=1 // pred_fallthru
      _
    // Predicated region
    $region6: #{tpu_custom_call.1} parent=1 // pred_check
      _
    $region7: #{tpu_custom_call.1} parent=1 // pred_check_branch
      %18 = sbr.rel (0) target = $region9
    $region8: #{tpu_custom_call.1} parent=1 // pred_region
      _
    $region9: #{tpu_custom_call.1} parent=1 // pred_fallthru
      _
    // Predicated region
    $region10: #{tpu_custom_call.1} parent=1 // pred_check
      _
    $region11: #{tpu_custom_call.1} parent=1 // pred_check_branch
      %20 = sbr.rel (0) target = $region13
    $region12: #{tpu_custom_call.1} parent=1 // pred_region
      _
    $region13: #{tpu_custom_call.1} parent=1 // pred_fallthru
      _
    // Predicated region
    $region14: #{tpu_custom_call.1} parent=1 // pred_check
      _
    $region15: #{tpu_custom_call.1} parent=1 // pred_check_branch
      %22 = sbr.rel (0) target = $region17
    $region16: #{tpu_custom_call.1} parent=1 // pred_region
      _
    $region17: #{tpu_custom_call.1} parent=1 // pred_fallthru
      _
    // Predicated region
    $region18: #{tpu_custom_call.1} parent=1 // pred_check
      _
    $region19: #{tpu_custom_call.1} parent=1 // pred_check_branch
      %24 = sbr.rel (0) target = $region21
    $region20: #{tpu_custom_call.1} parent=1 // pred_region
      _
    $region21: #{tpu_custom_call.1} parent=1 // pred_fallthru
      _
    // Predicated region
    $region22: #{tpu_custom_call.1} parent=1 // pred_check
      _
    $region23: #{tpu_custom_call.1} parent=1 // pred_check_branch
      %26 = sbr.rel (0) target = $region25
    $region24: #{tpu_custom_call.1} parent=1 // pred_region
      _
    $region25: #{tpu_custom_call.1} parent=1 // pred_fallthru
      _
    // Predicated region
    $region26: #{tpu_custom_call.1} parent=1 // pred_check
      _
    $region27: #{tpu_custom_call.1} parent=1 // pred_check_branch
      %28 = sbr.rel (0) target = $region29
    $region28: #{tpu_custom_call.1} parent=1 // pred_region
      _
    $region29: #{tpu_custom_call.1} parent=1 // pred_fallthru
      _
    %v29 = vld [vmem:[%s1] sm:$0xff]
    %v30 = vld [vmem:[%s1 + $0x8] sm:$0xff]
    %v31 = vld [vmem:[%s1 + $0x10] sm:$0xff]
    %v32 = vld [vmem:[%s1 + $0x18] sm:$0xff]
    %v33 = vld [vmem:[%s2] sm:$0xff]
    %v34 = vld [vmem:[%s2 + $0x8] sm:$0xff]
    %v35 = vld [vmem:[%s2 + $0x10] sm:$0xff]
    %v36 = vld [vmem:[%s2 + $0x18] sm:$0xff]
    %v37 = vld [vmem:[%s3] sm:$0xff]
    %v38 = vld [vmem:[%s3 + $0x8] sm:$0xff]
    %v39 = vld [vmem:[%s3 + $0x10] sm:$0xff]
    %v40 = vld [vmem:[%s3 + $0x18] sm:$0xff]
    %s41 = scalar_lea.vmem %s3, 32
    %v42 = vld [vmem:[%s41] sm:$0xff]
    %v43 = vld [vmem:[%s41 + $0x8] sm:$0xff]
    %v44 = vld [vmem:[%s41 + $0x10] sm:$0xff]
    %v45 = vld [vmem:[%s41 + $0x18] sm:$0xff]
    %v46 = vld [vmem:[%s4] sm:$0xff]
    %v47 = vld [vmem:[%s4 + $0x8] sm:$0xff]
    %v48 = vld [vmem:[%s4 + $0x10] sm:$0xff]
    %v49 = vld [vmem:[%s4 + $0x18] sm:$0xff]
    %s50 = scalar_lea.vmem %s4, 32
    %v51 = vld [vmem:[%s50] sm:$0xff]
    %v52 = vld [vmem:[%s50 + $0x8] sm:$0xff]
    %v53 = vld [vmem:[%s50 + $0x10] sm:$0xff]
    %v54 = vld [vmem:[%s50 + $0x18] sm:$0xff]
    %v55 = vld [vmem:[#allocation2] sm:$0x1]
    %v56 = vld [vmem:[%s5] sm:$0xff]
    %v57 = vld [vmem:[%s5 + $0x8] sm:$0xff]
    %v58 = vld [vmem:[%s5 + $0x10] sm:$0xff]
    %v59 = vld [vmem:[%s5 + $0x18] sm:$0xff]
    %v60 = vld [vmem:[%s0] sm:$0x3]
    %62 = vset.pattern.permute.xlu0 0
    %63 = vperm.xlu0 %62, %v29
    %v64 = vpop.permute.xlu0 %63
    %67 = vset.pattern.permute.xlu0 0
    %68 = vperm.xlu0 %67, %v30
    %v69 = vpop.permute.xlu0 %68
    %72 = vset.pattern.permute.xlu0 0
    %73 = vperm.xlu0 %72, %v31
    %v74 = vpop.permute.xlu0 %73
    %77 = vset.pattern.permute.xlu0 0
    %78 = vperm.xlu0 %77, %v32
    %v79 = vpop.permute.xlu0 %78
    %v81 = vlaneseq
    %v82 = vshrl.u32 %v81, 7
    %v83 = vsub.s32 0, %v82
    %v84 = vrot.slane %v60, %v83
    %v85 = vmul.f32 %v64, %v84
    %v86 = vmul.f32 %v69, %v84
    %v87 = vmul.f32 %v74, %v84
    %v88 = vmul.f32 %v79, %v84
    %89 = vset.pattern.permute.xlu0 1
    %90 = vperm.xlu0 %89, %v29
    %v91 = vpop.permute.xlu0 %90
    %93 = vset.pattern.permute.xlu0 1
    %94 = vperm.xlu0 %93, %v30
    %v95 = vpop.permute.xlu0 %94
    %97 = vset.pattern.permute.xlu0 1
    %98 = vperm.xlu0 %97, %v31
    %v99 = vpop.permute.xlu0 %98
    %101 = vset.pattern.permute.xlu0 1
    %102 = vperm.xlu0 %101, %v32
    %v103 = vpop.permute.xlu0 %102
    %v105 = vlaneseq
    %v106 = vshrl.u32 %v105, 7
    %v107 = vsub.s32 1, %v106
    %v108 = vrot.slane %v60, %v107
    %v109 = vmul.f32 %v91, %v108
    %v110 = vmul.f32 %v95, %v108
    %v111 = vmul.f32 %v99, %v108
    %v112 = vmul.f32 %v103, %v108
    %v113 = vadd.f32 %v85, %v109
    %v114 = vadd.f32 %v86, %v110
    %v115 = vadd.f32 %v87, %v111
    %v116 = vadd.f32 %v88, %v112
    %118 = vset.pattern.permute.xlu0 0
    %119 = vperm.xlu0 %118, %v33
    %v120 = vpop.permute.xlu0 %119
    %123 = vset.pattern.permute.xlu0 0
    %124 = vperm.xlu0 %123, %v34
    %v125 = vpop.permute.xlu0 %124
    %128 = vset.pattern.permute.xlu0 0
    %129 = vperm.xlu0 %128, %v35
    %v130 = vpop.permute.xlu0 %129
    %133 = vset.pattern.permute.xlu0 0
    %134 = vperm.xlu0 %133, %v36
    %v135 = vpop.permute.xlu0 %134
    %v137 = vadd.f32 %v113, %v120
    %v138 = vadd.f32 %v114, %v125
    %v139 = vadd.f32 %v115, %v130
    %v140 = vadd.f32 %v116, %v135
    %v141 = vtanh.pop %v137
    %v142 = vtanh.pop %v138
    %v143 = vtanh.pop %v139
    %v144 = vtanh.pop %v140
    %146 = vset.pattern.permute.xlu0 0
    %147 = vperm.xlu0 %146, %v46
    %v148 = vpop.permute.xlu0 %147
    %151 = vset.pattern.permute.xlu0 0
    %152 = vperm.xlu0 %151, %v47
    %v153 = vpop.permute.xlu0 %152
    %156 = vset.pattern.permute.xlu0 0
    %157 = vperm.xlu0 %156, %v48
    %v158 = vpop.permute.xlu0 %157
    %161 = vset.pattern.permute.xlu0 0
    %162 = vperm.xlu0 %161, %v49
    %v163 = vpop.permute.xlu0 %162
    %vm165 = vcmask 261120
    %v167 = vsel %vm165, %v37, 0
    %v170 = vsel %vm165, %v38, 0
    %v173 = vsel %vm165, %v39, 0
    %v176 = vsel %vm165, %v40, 0
    %178 = vmatprep.subr.mxu0 0.0
    %179 = vmatpush1.msra.mxu0 %v141
    %180 = vmatprep.subr.mxu0 0.0
    %181 = vmatpush1.msra.mxu0 %v142
    %182 = vmatprep.subr.mxu0 0.0
    %183 = vmatpush1.msra.mxu0 %v143
    %184 = vmatprep.subr.mxu0 0.0
    %185 = vmatpush1.msra.mxu0 %v144
    %186 = vmatprep.subr.mxu0 0.0
    %187 = vmatpush1.msra.mxu0 0.0
    %188 = vmatprep.subr.mxu0 0.0
    %189 = vmatpush1.msra.mxu0 0.0
    %190 = vmatprep.subr.mxu0 0.0
    %191 = vmatpush1.msra.mxu0 0.0
    %192 = vmatprep.subr.mxu0 0.0
    %193 = vmatpush1.msra.mxu0 0.0
    %194 = vmatprep.subr.mxu0 0.0
    %195 = vmatpush1.msra.mxu0 0.0
    %196 = vmatprep.subr.mxu0 0.0
    %197 = vmatpush1.msra.mxu0 0.0
    %198 = vmatprep.subr.mxu0 0.0
    %199 = vmatpush1.msra.mxu0 0.0
    %200 = vmatprep.subr.mxu0 0.0
    %201 = vmatpush1.msra.mxu0 0.0
    %202 = vmatprep.subr.mxu0 0.0
    %203 = vmatpush1.msra.mxu0 0.0
    %204 = vmatprep.subr.mxu0 0.0
    %205 = vmatpush1.msra.mxu0 0.0
    %206 = vmatprep.subr.mxu0 0.0
    %207 = vmatpush1.msra.mxu0 0.0
    %208 = vmatprep.subr.mxu0 0.0
    %209 = vmatpush1.msra.mxu0 0.0
    %210 = vmatprep.subr.mxu0 0.0
    %211 = vmatpush1.msra.mxu0 0.0
    %212 = vmatprep.subr.mxu0 0.0
    %213 = vmatpush1.msra.mxu0 0.0
    %214 = vmatprep.subr.mxu0 0.0
    %215 = vmatpush1.msra.mxu0 0.0
    %216 = vmatprep.subr.mxu0 0.0
    %217 = vmatpush1.msra.mxu0 0.0
    %218 = vmatprep.subr.mxu0 0.0
    %219 = vmatpush1.msra.mxu0 0.0
    %220 = vmatprep.subr.mxu0 0.0
    %221 = vmatpush1.msra.mxu0 0.0
    %222 = vmatprep.subr.mxu0 0.0
    %223 = vmatpush1.msra.mxu0 0.0
    %224 = vmatprep.subr.mxu0 0.0
    %225 = vmatpush1.msra.mxu0 0.0
    %226 = vmatprep.subr.mxu0 0.0
    %227 = vmatpush1.msra.mxu0 0.0
    %228 = vmatprep.subr.mxu0 0.0
    %229 = vmatpush1.msra.mxu0 0.0
    %230 = vmatprep.subr.mxu0 0.0
    %231 = vmatpush1.msra.mxu0 0.0
    %232 = vmatprep.subr.mxu0 0.0
    %233 = vmatpush1.msra.mxu0 0.0
    %234 = vmatprep.subr.mxu0 0.0
    %235 = vmatpush1.msra.mxu0 0.0
    %236 = vmatprep.subr.mxu0 0.0
    %237 = vmatpush1.msra.mxu0 0.0
    %238 = vmatprep.subr.mxu0 0.0
    %239 = vmatpush1.msra.mxu0 0.0
    %240 = vmatprep.subr.mxu0 0.0
    %241 = vmatpush1.msra.mxu0 0.0
    %242 = vmatprep.mubr.f32.mxu0 0.0
    %243 = vmatmul.mubr.f32.gmra.mrb[0].mxu0 %v167
    %v244 = vpop.f32.mrb[0].mxu0
    %v245 = vadd.f32 %v148, %v244
    %v246 = vpop.f32.mrb[0].mxu0
    %247 = vmatprep.mubr.f32.mxu0 0.0
    %248 = vmatmul.mubr.f32.gmra.mrb[0].mxu0 %v170
    %v249 = vpop.f32.mrb[0].mxu0
    %v250 = vadd.f32 %v153, %v249
    %v251 = vpop.f32.mrb[0].mxu0
    %252 = vmatprep.mubr.f32.mxu0 0.0
    %253 = vmatmul.mubr.f32.gmra.mrb[0].mxu0 %v173
    %v254 = vpop.f32.mrb[0].mxu0
    %v255 = vadd.f32 %v158, %v254
    %v256 = vpop.f32.mrb[0].mxu0
    %257 = vmatprep.mubr.f32.mxu0 0.0
    %258 = vmatmul.mubr.f32.gmra.mrb[0].mxu0 %v176
    %v259 = vpop.f32.mrb[0].mxu0
    %v260 = vadd.f32 %v163, %v259
    %v261 = vpop.f32.mrb[0].mxu0
    %262 = vdwg.mxu0
    %v263 = vtanh.pop %v245
    %v264 = vtanh.pop %v250
    %v265 = vtanh.pop %v255
    %v266 = vtanh.pop %v260
    %268 = vset.pattern.permute.xlu0 0
    %269 = vperm.xlu0 %268, %v51
    %v270 = vpop.permute.xlu0 %269
    %273 = vset.pattern.permute.xlu0 0
    %274 = vperm.xlu0 %273, %v52
    %v275 = vpop.permute.xlu0 %274
    %278 = vset.pattern.permute.xlu0 0
    %279 = vperm.xlu0 %278, %v53
    %v280 = vpop.permute.xlu0 %279
    %283 = vset.pattern.permute.xlu0 0
    %284 = vperm.xlu0 %283, %v54
    %v285 = vpop.permute.xlu0 %284
    %v288 = vsel %vm165, %v42, 0
    %v291 = vsel %vm165, %v43, 0
    %v294 = vsel %vm165, %v44, 0
    %v297 = vsel %vm165, %v45, 0
    %299 = vmatprep.subr.mxu0 0.0
    %300 = vmatpush1.msra.mxu0 %v263
    %301 = vmatprep.subr.mxu0 0.0
    %302 = vmatpush1.msra.mxu0 %v264
    %303 = vmatprep.subr.mxu0 0.0
    %304 = vmatpush1.msra.mxu0 %v265
    %305 = vmatprep.subr.mxu0 0.0
    %306 = vmatpush1.msra.mxu0 %v266
    %307 = vmatprep.subr.mxu0 0.0
    %308 = vmatpush1.msra.mxu0 0.0
    %309 = vmatprep.subr.mxu0 0.0
    %310 = vmatpush1.msra.mxu0 0.0
    %311 = vmatprep.subr.mxu0 0.0
    %312 = vmatpush1.msra.mxu0 0.0
    %313 = vmatprep.subr.mxu0 0.0
    %314 = vmatpush1.msra.mxu0 0.0
    %315 = vmatprep.subr.mxu0 0.0
    %316 = vmatpush1.msra.mxu0 0.0
    %317 = vmatprep.subr.mxu0 0.0
    %318 = vmatpush1.msra.mxu0 0.0
    %319 = vmatprep.subr.mxu0 0.0
    %320 = vmatpush1.msra.mxu0 0.0
    %321 = vmatprep.subr.mxu0 0.0
    %322 = vmatpush1.msra.mxu0 0.0
    %323 = vmatprep.subr.mxu0 0.0
    %324 = vmatpush1.msra.mxu0 0.0
    %325 = vmatprep.subr.mxu0 0.0
    %326 = vmatpush1.msra.mxu0 0.0
    %327 = vmatprep.subr.mxu0 0.0
    %328 = vmatpush1.msra.mxu0 0.0
    %329 = vmatprep.subr.mxu0 0.0
    %330 = vmatpush1.msra.mxu0 0.0
    %331 = vmatprep.subr.mxu0 0.0
    %332 = vmatpush1.msra.mxu0 0.0
    %333 = vmatprep.subr.mxu0 0.0
    %334 = vmatpush1.msra.mxu0 0.0
    %335 = vmatprep.subr.mxu0 0.0
    %336 = vmatpush1.msra.mxu0 0.0
    %337 = vmatprep.subr.mxu0 0.0
    %338 = vmatpush1.msra.mxu0 0.0
    %339 = vmatprep.subr.mxu0 0.0
    %340 = vmatpush1.msra.mxu0 0.0
    %341 = vmatprep.subr.mxu0 0.0
    %342 = vmatpush1.msra.mxu0 0.0
    %343 = vmatprep.subr.mxu0 0.0
    %344 = vmatpush1.msra.mxu0 0.0
    %345 = vmatprep.subr.mxu0 0.0
    %346 = vmatpush1.msra.mxu0 0.0
    %347 = vmatprep.subr.mxu0 0.0
    %348 = vmatpush1.msra.mxu0 0.0
    %349 = vmatprep.subr.mxu0 0.0
    %350 = vmatpush1.msra.mxu0 0.0
    %351 = vmatprep.subr.mxu0 0.0
    %352 = vmatpush1.msra.mxu0 0.0
    %353 = vmatprep.subr.mxu0 0.0
    %354 = vmatpush1.msra.mxu0 0.0
    %355 = vmatprep.subr.mxu0 0.0
    %356 = vmatpush1.msra.mxu0 0.0
    %357 = vmatprep.subr.mxu0 0.0
    %358 = vmatpush1.msra.mxu0 0.0
    %359 = vmatprep.subr.mxu0 0.0
    %360 = vmatpush1.msra.mxu0 0.0
    %361 = vmatprep.subr.mxu0 0.0
    %362 = vmatpush1.msra.mxu0 0.0
    %363 = vmatprep.mubr.f32.mxu0 0.0
    %364 = vmatmul.mubr.f32.gmra.mrb[0].mxu0 %v288
    %v365 = vpop.f32.mrb[0].mxu0
    %v366 = vadd.f32 %v270, %v365
    %v367 = vpop.f32.mrb[0].mxu0
    %368 = vmatprep.mubr.f32.mxu0 0.0
    %369 = vmatmul.mubr.f32.gmra.mrb[0].mxu0 %v291
    %v370 = vpop.f32.mrb[0].mxu0
    %v371 = vadd.f32 %v275, %v370
    %v372 = vpop.f32.mrb[0].mxu0
    %373 = vmatprep.mubr.f32.mxu0 0.0
    %374 = vmatmul.mubr.f32.gmra.mrb[0].mxu0 %v294
    %v375 = vpop.f32.mrb[0].mxu0
    %v376 = vadd.f32 %v280, %v375
    %v377 = vpop.f32.mrb[0].mxu0
    %378 = vmatprep.mubr.f32.mxu0 0.0
    %379 = vmatmul.mubr.f32.gmra.mrb[0].mxu0 %v297
    %v380 = vpop.f32.mrb[0].mxu0
    %v381 = vadd.f32 %v285, %v380
    %v382 = vpop.f32.mrb[0].mxu0
    %383 = vdwg.mxu0
    %v384 = vtanh.pop %v366
    %v385 = vtanh.pop %v371
    %v386 = vtanh.pop %v376
    %v387 = vtanh.pop %v381
    %389 = vset.pattern.permute.xlu0 0
    %390 = vperm.xlu0 %389, %v56
    %v391 = vpop.permute.xlu0 %390
    %394 = vset.pattern.permute.xlu0 0
    %395 = vperm.xlu0 %394, %v57
    %v396 = vpop.permute.xlu0 %395
    %399 = vset.pattern.permute.xlu0 0
    %400 = vperm.xlu0 %399, %v58
    %v401 = vpop.permute.xlu0 %400
    %404 = vset.pattern.permute.xlu0 0
    %405 = vperm.xlu0 %404, %v59
    %v406 = vpop.permute.xlu0 %405
    %v408 = vmul.f32 %v391, %v384
    %v409 = vmul.f32 %v396, %v385
    %v410 = vmul.f32 %v401, %v386
    %v411 = vmul.f32 %v406, %v387
    %v412 = vadd.f32 %v408, %v409
    %v413 = vadd.f32 %v412, %v410
    %v414 = vadd.f32 %v413, %v411
    %v415 = vrot.slane %v414, 4
    %v416 = vadd.f32 %v414, %v415
    %v417 = vrot.slane %v416, 2
    %v418 = vadd.f32 %v416, %v417
    %v419 = vrot.slane %v418, 1
    %v420 = vadd.f32 %v418, %v419
    %422 = vset.pattern.permute.xlu0 0
    %423 = vperm.xlu0 %422, %v55
    %v424 = vpop.permute.xlu0 %423
    %v426 = vlaneseq
    %v427 = vshrl.u32 %v426, 7
    %v428 = vsub.s32 0, %v427
    %v429 = vrot.slane %v424, %v428
    %v430 = vadd.f32 %v420, %v429
    %431 = vst [vmem:[#allocation3] sm:$0x1] %v430
    // Predicated region
    $region30: #{tpu_custom_call.1} parent=1 // pred_check
      _
    $region31: #{tpu_custom_call.1} parent=1 // pred_check_branch
      %433 = sbr.rel (0) target = $region33
    $region32: #{tpu_custom_call.1} parent=1 // pred_region
      %s435 = ssub.s32 16, 16
      %436 = vsyncadd [#allocation4], %s435
      %s438 = sshll.u32 [#allocation3], 4
      %s439 = int_to_ptr.vmem [resolvable:$true] %s438
      %441 = dma.vmem_to_hbm [thread:$0]  %s439, 16, %s7, [#allocation4]
    $region33: #{tpu_custom_call.1} parent=1 // pred_fallthru
      _
    // Predicated region
    $region34: #{tpu_custom_call.1} parent=1 // pred_check
      _
    $region35: #{tpu_custom_call.1} parent=1 // pred_check_branch
      %443 = sbr.rel (0) target = $region37
    $region36: #{tpu_custom_call.1} parent=1 // pred_region
      %444 = dma.done [#allocation4], 16
    $region37: #{tpu_custom_call.1} parent=1 // pred_fallthru
      _
    %445 = vsyncpa [#allocation4], 1

</llo_original>
